<compile_context>
chip_gen: v7x
topology: tpu7x:2x2x1
jax: 0.10.0
libtpu: 0.0.40
codegen_flags: <defaults>
</compile_context>

<pallas_src>
import functools

import jax
import jax.numpy as jnp
from jax.experimental import pallas as pl
from jax.experimental.pallas import tpu as pltpu


# ----------------------------- pass-1 kernels (raw energies) -----------------


def _dot_kernel(hid_ref, enc_ref, out_ref):
    # energy[s, b] = sum_h enc[s, b, h] * hid[b, h]   (f32 accumulation)
    hid = hid_ref[...].astype(jnp.float32)                        # [tB, H]
    scores = jnp.sum(enc_ref[...] * hid[None, :, :], axis=-1)     # [tS, tB] f32
    out_ref[...] = scores.astype(out_ref.dtype)


def _general_kernel(hid_ref, enc_ref, w_ref, out_ref):
    # hidden . (enc @ W.T + b) == (hidden @ W) . enc + hidden.b; the hidden.b
    # term is constant along S and cancels in the softmax -> dropped.
    # Recomputing (hidden @ W) every step costs 2*tB*H^2 MXU flops, negligible
    # next to the HBM stream, and keeps all grid steps independent.
    heff = jnp.dot(hid_ref[...], w_ref[...],
                   preferred_element_type=jnp.float32)             # [tB, H] f32
    scores = jnp.sum(enc_ref[...] * heff[None, :, :], axis=-1)     # [tS, tB] f32
    out_ref[...] = scores.astype(out_ref.dtype)


def _concat_kernel(hid_ref, enc_ref, w_h_ref, w_e_ref, b_ref, v_ref, out_ref,
                   *, tanh_dtype):
    # cat([hid, enc]) @ W.T + b == (hid @ W_h.T + b) + enc @ W_e.T
    chid = jax.lax.dot_general(                                    # hid @ W_h.T
        hid_ref[...], w_h_ref[...], (((1,), (1,)), ((), ())),
        preferred_element_type=jnp.float32)
    chid = chid + b_ref[...].astype(jnp.float32)                   # [tB, H] f32
    # Single fat (tS*tB, H) x (H, H) MXU contraction, default precision.
    e_enc = jnp.einsum("sbh,oh->sbo", enc_ref[...], w_e_ref[...],
                       preferred_element_type=jnp.float32)         # [tS,tB,H]
    energy = jnp.tanh((e_enc + chid[None, :, :]).astype(tanh_dtype))  # EUP
    scores = jnp.sum(energy * v_ref[...][None, :, :], axis=-1)     # f32 accum
    out_ref[...] = scores.astype(out_ref.dtype)


# ----------------------------- pass-2 kernel (softmax over S) ----------------


def _softmax_kernel(e_ref, o_ref):
    e = e_ref[...].astype(jnp.float32)                 # [S, tB]
    m = jnp.max(e, axis=0, keepdims=True)
    z = jnp.exp(e - m)
    denom = jnp.sum(z, axis=0, keepdims=True)
    inv = pl.reciprocal(denom, approx=True)            # EUP slot
    inv = inv * (2.0 - denom * inv)                    # one Newton step
    o_ref[...] = (z * inv).astype(o_ref.dtype)


# ----------------------------- tiling helpers ---------------------------------


def _round_up(x, m):
    return (x + m - 1) // m * m


def _vmem_capacity_bytes():
    try:
        return int(pltpu.get_tpu_info().vmem_capacity_bytes)
    except Exception:
        return 64 * 1024 * 1024     # conservative: v7x per-TensorCore VMEM


def _gen_caps(vmem_phys):
    if vmem_phys >= 96 * 1024 * 1024:
        # v5e / v6e: 128 MiB VMEM -> big streaming tiles amortize step overhead.
        return dict(vmem_limit=96 * 1024 * 1024,
                    stream_budget=48 * 1024 * 1024,
                    max_s_tile=2048)
    # v7x: 64 MiB per TensorCore -> keep everything well under budget.
    return dict(vmem_limit=48 * 1024 * 1024,
                stream_budget=16 * 1024 * 1024,
                max_s_tile=1024)


def _default_b_tile(B):
    # Pass-1 out block is [s_tile, b_tile]: its lane dim b_tile must be a
    # multiple of 128 or equal B.
    if B % 128 != 0:
        return B
    return min(B, 256)


def _auto_s_tile(S, b_tile, H, enc_itemsize, method, caps):
    if S <= 8:
        return S
    fixed = 0
    if method == "general":
        fixed = 2 * H * H * enc_itemsize
    elif method == "concat":
        fixed = 4 * H * H * enc_itemsize
    budget = max(caps["stream_budget"] - 2 * fixed, 2 * 1024 * 1024)
    # Per-S-row bytes: double-buffered encoder tile + double-buffered out tile.
    per_s = 2 * b_tile * H * enc_itemsize + 2 * b_tile * 4
    max_tile = caps["max_s_tile"]
    if method == "concat":
        # Compute-bound: small tiles are fine, and the f32 [tS,tB,H] e_enc /
        # energy temporaries dominate VMEM pressure.
        per_s += 3 * b_tile * H * 4
        max_tile = min(max_tile, 256)
    s_tile = min(max_tile, _round_up(S, 8))
    while s_tile > 8 and s_tile * per_s > budget:
        s_tile = max(8, (s_tile // 2) // 8 * 8)
    return s_tile


def _softmax_b_tile(B, S, budget):
    # Pass-2 block is [S, b_tile]: lane dim b_tile must be a multiple of 128
    # or equal B.
    if B % 128 != 0:
        return B
    bt = min(B, 512) // 128 * 128
    while bt > 128 and 4 * bt * S * 4 > budget:
        bt = max(128, (bt // 2) // 128 * 128)
    return bt


# ----------------------------- wrapper ---------------------------------------


@functools.partial(jax.jit,
                   static_argnames=("method", "s_tile", "b_tile", "stream_dtype"))
def attention_forward(method, hidden, encoder_output, params, *,
                      s_tile=None, b_tile=None, stream_dtype=None):
    """hidden [1, B, H], encoder_output [S, B, H] -> [B, 1, S] (float32)."""
    if method not in ("dot", "general", "concat"):
        raise ValueError(f"{method!r} is not an appropriate attention method.")
    S, B, H = encoder_output.shape

    # Encoder is streamed in whatever dtype it arrives in; pass bf16 upstream
    # (or set stream_dtype=jnp.bfloat16) to halve HBM traffic of the
    # bandwidth-bound dot/general methods.  Scores always accumulate in f32.
    if stream_dtype is not None:
        encoder_output = encoder_output.astype(stream_dtype)
    enc_dtype = encoder_output.dtype
    enc_itemsize = encoder_output.dtype.itemsize
    hidden2d = hidden[0].astype(enc_dtype)                     # [B, H] (tiny)

    caps = _gen_caps(_vmem_capacity_bytes())

    # ---- tile selection ------------------------------------------------------
    if b_tile is None:
        b_tile = _default_b_tile(B)
    assert b_tile == B or b_tile % 128 == 0, (B, b_tile)
    if s_tile is None:
        s_tile = _auto_s_tile(S, b_tile, H, enc_itemsize, method, caps)
    assert s_tile == S or s_tile % 8 == 0, (S, s_tile)

    grid_b = pl.cdiv(B, b_tile)
    grid_s = pl.cdiv(S, s_tile)

    # ---- pass 1: raw attention energies [S, B], streamed straight to HBM ----
    hid_spec = pl.BlockSpec((b_tile, H), lambda bi, si: (bi, 0))
    enc_spec = pl.BlockSpec((s_tile, b_tile, H), lambda bi, si: (si, bi, 0))
    mat_spec = pl.BlockSpec((H, H), lambda bi, si: (0, 0))
    row_spec = pl.BlockSpec((1, H), lambda bi, si: (0, 0))
    out_spec = pl.BlockSpec((s_tile, b_tile), lambda bi, si: (si, bi))

    if method == "dot":
        kernel = _dot_kernel
        inputs = (hidden2d, encoder_output)
        in_specs = [hid_spec, enc_spec]
    elif method == "general":
        # hidden.b is constant along S and cancels in the softmax -> not passed.
        kernel = _general_kernel
        inputs = (hidden2d, encoder_output, params["w"].astype(enc_dtype))
        in_specs = [hid_spec, enc_spec, mat_spec]
    else:  # concat
        w = params["w"]                                        # [H, 2H]
        tanh_dtype = jnp.bfloat16 if enc_dtype == jnp.bfloat16 else jnp.float32
        kernel = functools.partial(_concat_kernel, tanh_dtype=tanh_dtype)
        inputs = (hidden2d, encoder_output,
                  w[:, :H].astype(enc_dtype), w[:, H:].astype(enc_dtype),
                  params["b"].reshape(1, H).astype(jnp.float32),
                  params["v"].reshape(1, H).astype(jnp.float32))
        in_specs = [hid_spec, enc_spec, mat_spec, mat_spec, row_spec, row_spec]

    # ---- advisory cost estimate ----------------------------------------------
    flops = 2 * S * B * H
    trans = 0
    if method == "general":
        flops += 2 * B * H * H * grid_s
    elif method == "concat":
        flops += 2 * S * B * H * H + 2 * S * B * H + 2 * B * H * H * grid_s
        trans += S * B * H
    bytes_accessed = (S * B * H * enc_itemsize + B * H * enc_itemsize
                      + S * B * 4 + 4 * H * H * enc_itemsize)

    energies = pl.pallas_call(
        kernel,
        out_shape=jax.ShapeDtypeStruct((S, B), jnp.float32),
        grid_spec=pltpu.PrefetchScalarGridSpec(
            num_scalar_prefetch=0,
            grid=(grid_b, grid_s),
            in_specs=in_specs,
            out_specs=out_spec),
        compiler_params=pltpu.CompilerParams(
            dimension_semantics=("parallel", "parallel"),
            vmem_limit_bytes=caps["vmem_limit"]),
        cost_estimate=pl.CostEstimate(flops=int(flops), transcendentals=int(trans),
                                      bytes_accessed=int(bytes_accessed)),
    )(*inputs)

    # ---- pass 2: softmax over S (touches only S*B*4 bytes, ~1/H of pass 1) ---
    b2 = _softmax_b_tile(B, S, caps["stream_budget"])
    probs = pl.pallas_call(
        _softmax_kernel,
        out_shape=jax.ShapeDtypeStruct((S, B), jnp.float32),
        grid_spec=pltpu.PrefetchScalarGridSpec(
            num_scalar_prefetch=0,
            grid=(pl.cdiv(B, b2),),
            in_specs=[pl.BlockSpec((S, b2), lambda bi: (0, bi))],
            out_specs=pl.BlockSpec((S, b2), lambda bi: (0, bi))),
        compiler_params=pltpu.CompilerParams(
            dimension_semantics=("parallel",),
            vmem_limit_bytes=caps["vmem_limit"]),
        cost_estimate=pl.CostEstimate(flops=int(4 * S * B),
                                      transcendentals=int(S * B),
                                      bytes_accessed=int(2 * S * B * 4)),
    )(energies)

    # Only the tiny [S, B] probability matrix is transposed (in XLA).
    return probs.T[:, None, :]                                  # [B, 1, S]


# --------------------------- pure-JAX reference ------------------------------


def attention_reference(method, hidden, encoder_output, params):
    hp = jax.lax.Precision.HIGHEST
    h = hidden[0].astype(jnp.float32)                                    # [B, H]
    enc = encoder_output.astype(jnp.float32)
    if method == "dot":
        energy = jnp.sum(h[None, :, :] * enc, axis=2)                    # [S, B]
    elif method == "general":
        e = jnp.einsum("sbh,oh->sbo", enc, params["w"], precision=hp) + params["b"]
        energy = jnp.sum(h[None, :, :] * e, axis=2)
    else:  # concat
        S = enc.shape[0]
        h_exp = jnp.broadcast_to(h[None, :, :], (S,) + h.shape)
        cat = jnp.concatenate([h_exp, enc], axis=2)                      # [S, B, 2H]
        e = jnp.tanh(jnp.einsum("sbk,ok->sbo", cat, params["w"], precision=hp)
                     + params["b"])
        energy = jnp.sum(params["v"] * e, axis=2)
    return jax.nn.softmax(energy.T, axis=1)[:, None, :]                  # [B, 1, S]


# --------------------------------- main --------------------------------------


if __name__ == "__main__":
    key = jax.random.PRNGKey(0)

    # (S, B, H, s_tile, b_tile, dtype, tol):
    #   cfg 1: module demo scale, auto tiling, f32 streaming.
    #   cfg 2: ragged S tail (300 % 128 != 0, no encoder pad), bf16 streaming,
    #          multi-tile S grid with grid_b == 1.
    configs = [
        (8,   2,  32, None, None, jnp.float32,  1e-2),
        (300, 64, 32, 128,  64,   jnp.bfloat16, 3e-2),
    ]

    ok = True
    for (S, B, H, s_tile, b_tile, dtype, tol) in configs:
        key, k_hid, k_enc, k_wg, k_bg, k_wc, k_bc, k_v = jax.random.split(key, 8)
        # GRU-like activations live in (-1, 1).
        hidden = jax.random.uniform(k_hid, (1, B, H), jnp.float32,
                                    -1.0, 1.0).astype(dtype)
        encoder_output = jax.random.uniform(k_enc, (S, B, H), jnp.float32,
                                            -1.0, 1.0).astype(dtype)
        params_by_method = {
            "dot": {},
            "general": {
                "w": jax.random.normal(k_wg, (H, H), dtype=jnp.float32) * 0.1,
                "b": jax.random.normal(k_bg, (H,), dtype=jnp.float32) * 0.1,
            },
            "concat": {
                "w": jax.random.normal(k_wc, (H, 2 * H), dtype=jnp.float32) * 0.1,
                "b": jax.random.normal(k_bc, (H,), dtype=jnp.float32) * 0.1,
                "v": jax.random.normal(k_v, (H,), dtype=jnp.float32) * 0.1,
            },
        }
        for method in ("dot", "general", "concat"):
            params = params_by_method[method]
            out = attention_forward(method, hidden, encoder_output, params,
                                    s_tile=s_tile, b_tile=b_tile)
            out = jax.block_until_ready(out)
            ref = attention_reference(method, hidden, encoder_output, params)
            if out.shape != (B, 1, S):
                ok = False
                print(f"shape mismatch: {method} S={S} B={B}: {out.shape}")
                continue
            if not jnp.allclose(out, ref, atol=tol, rtol=tol):
                ok = False
                print(f"value mismatch: {method} S={S} B={B} {dtype.__name__}: "
                      f"max|diff|={float(jnp.max(jnp.abs(out - ref)))}")

    if ok:
        print("KERNEL_OK")
</pallas_src>

<mosaic_0001>
module attributes {stable_mosaic.version = 11 : i64} {
  func.func @_dot_kernel(%arg0: i32, %arg1: i32, %arg2: memref<2x32xf32, #tpu.memory_space<vmem>>, %arg3: memref<8x2x32xf32, #tpu.memory_space<vmem>>, %arg4: memref<8x2xf32, #tpu.memory_space<vmem>>) attributes {dimension_semantics = [#tpu.dimension_semantics<parallel>, #tpu.dimension_semantics<parallel>], iteration_bounds = array<i64: 1, 1>, scalar_prefetch = 0 : i64, scratch_operands = 0 : i64, tpu.core_type = #tpu.core_type<tc>, window_params = [{transform_indices = @transform_0, window_bounds = array<i64: 2, 32>}, {transform_indices = @transform_1, window_bounds = array<i64: 8, 2, 32>}, {transform_indices = @transform_2, window_bounds = array<i64: 8, 2>}]} {
    %c0 = arith.constant 0 : index
    %c0_0 = arith.constant 0 : index
    %0 = vector.load %arg2[%c0, %c0_0] : memref<2x32xf32, #tpu.memory_space<vmem>>, vector<2x32xf32>
    %c0_1 = arith.constant 0 : index
    %c0_2 = arith.constant 0 : index
    %c0_3 = arith.constant 0 : index
    %1 = vector.load %arg3[%c0_1, %c0_2, %c0_3] : memref<8x2x32xf32, #tpu.memory_space<vmem>>, vector<8x2x32xf32>
    %2 = vector.shape_cast %0 : vector<2x32xf32> to vector<1x2x32xf32>
    %3 = vector.broadcast %2 : vector<1x2x32xf32> to vector<8x2x32xf32>
    %4 = arith.mulf %1, %3 : vector<8x2x32xf32>
    %cst = arith.constant dense<0.000000e+00> : vector<8x2xf32>
    %5 = vector.multi_reduction <add>, %4, %cst [2] : vector<8x2x32xf32> to vector<8x2xf32>
    %c0_4 = arith.constant 0 : index
    %c0_5 = arith.constant 0 : index
    %6 = vector.load %arg4[%c0_4, %c0_5] : memref<8x2xf32, #tpu.memory_space<vmem>>, vector<8x2xf32>
    tpu.vector_store %arg4[%c0_4, %c0_5], %5 {strides = array<i32>} : memref<8x2xf32, #tpu.memory_space<vmem>>, vector<8x2xf32>,
    return
  }
  func.func @transform_0(%arg0: i32, %arg1: i32) -> (i32, i32) {
    %c0_i32 = arith.constant 0 : i32
    %c0_i32_0 = arith.constant 0 : i32
    return %arg0, %c0_i32 : i32, i32
  }
  func.func @transform_1(%arg0: i32, %arg1: i32) -> (i32, i32, i32) {
    %c0_i32 = arith.constant 0 : i32
    %c0_i32_0 = arith.constant 0 : i32
    return %arg1, %arg0, %c0_i32 : i32, i32, i32
  }
  func.func @transform_2(%arg0: i32, %arg1: i32) -> (i32, i32) {
    %c0_i32 = arith.constant 0 : i32
    return %arg1, %arg0 : i32, i32
  }
}

module attributes {stable_mosaic.version = 11 : i64} {
  func.func @_softmax_kernel(%arg0: i32, %arg1: memref<8x2xf32, #tpu.memory_space<vmem>>, %arg2: memref<8x2xf32, #tpu.memory_space<vmem>>) attributes {dimension_semantics = [#tpu.dimension_semantics<parallel>], iteration_bounds = array<i64: 1>, scalar_prefetch = 0 : i64, scratch_operands = 0 : i64, tpu.core_type = #tpu.core_type<tc>, window_params = [{transform_indices = @transform_0, window_bounds = array<i64: 8, 2>}, {transform_indices = @transform_1, window_bounds = array<i64: 8, 2>}]} {
    %c0 = arith.constant 0 : index
    %c0_0 = arith.constant 0 : index
    %0 = vector.load %arg1[%c0, %c0_0] : memref<8x2xf32, #tpu.memory_space<vmem>>, vector<8x2xf32>
    %cst = arith.constant dense<0xFF800000> : vector<2xf32>
    %1 = vector.multi_reduction <maximumf>, %0, %cst [0] : vector<8x2xf32> to vector<2xf32>
    %2 = vector.shape_cast %1 : vector<2xf32> to vector<1x2xf32>
    %3 = vector.broadcast %2 : vector<1x2xf32> to vector<8x2xf32>
    %4 = arith.subf %0, %3 : vector<8x2xf32>
    %5 = math.exp %4 : vector<8x2xf32>
    %cst_1 = arith.constant dense<0.000000e+00> : vector<2xf32>
    %6 = vector.multi_reduction <add>, %5, %cst_1 [0] : vector<8x2xf32> to vector<2xf32>
    %7 = vector.shape_cast %6 : vector<2xf32> to vector<1x2xf32>
    %8 = tpu.reciprocal %7 {approx = true} : vector<1x2xf32> -> vector<1x2xf32>
    %9 = arith.mulf %7, %8 : vector<1x2xf32>
    %cst_2 = arith.constant 2.000000e+00 : f32
    %10 = vector.broadcast %cst_2 : f32 to vector<1x2xf32>
    %11 = arith.subf %10, %9 : vector<1x2xf32>
    %12 = arith.mulf %8, %11 : vector<1x2xf32>
    %13 = vector.broadcast %12 : vector<1x2xf32> to vector<8x2xf32>
    %14 = arith.mulf %5, %13 : vector<8x2xf32>
    %c0_3 = arith.constant 0 : index
    %c0_4 = arith.constant 0 : index
    %15 = vector.load %arg2[%c0_3, %c0_4] : memref<8x2xf32, #tpu.memory_space<vmem>>, vector<8x2xf32>
    tpu.vector_store %arg2[%c0_3, %c0_4], %14 {strides = array<i32>} : memref<8x2xf32, #tpu.memory_space<vmem>>, vector<8x2xf32>,
    return
  }
  func.func @transform_0(%arg0: i32) -> (i32, i32) {
    %c0_i32 = arith.constant 0 : i32
    %c0_i32_0 = arith.constant 0 : i32
    return %c0_i32, %arg0 : i32, i32
  }
  func.func @transform_1(%arg0: i32) -> (i32, i32) {
    %c0_i32 = arith.constant 0 : i32
    %c0_i32_0 = arith.constant 0 : i32
    return %c0_i32, %arg0 : i32, i32
  }
}

</mosaic_0001>

<llo_original>
// kernel: attention_forward.2
$region0: #{attention_forward.2}
  #allocation0 [shape = 'u32[]', space=smem, size = 0x4, offset = 0x4, fixed_abs, tag = 'smem constant byte address 0x4 - core index']
  #allocation1 [shape = 'u32[144,128]{1,0:T(1,128)}', space=vmem, size = 0x12000, scoped, tag = 'internal scratch']
  %s0 = inlined_call_operand.vmem [shape: f32[2,32], index: 0, kind: input, shape index: {}]
  %s1 = inlined_call_operand.hbm [shape: f32[8,2,32], index: 1, kind: input, shape index: {}]
  %s2 = inlined_call_operand.vmem [shape: f32[8,2], index: 2, kind: output, shape index: {}]
  %s3 = sld [smem:[#allocation0]]
  $region22: #{attention_forward.2} parent=0
    _
  %s5 = ssub.s32 1, %s3
  %s6 = scalar_select 0, %s5, %s3
  $region1: #{attention_forward.2} parent=0
    #allocation2 [shape = 'u8[8192]{0}', space=vmem, size = 0x2000, scoped, tag = 'input window, operand 1, single buffered']
    #allocation3 [shape = 's32[1]{0}', space=sflag, size = 0x4, scoped, tag = 'scoped memory for attention_forward.2']
    %7 = vsyncpa [#allocation3], 0
    // Predicated region
    $region2: #{attention_forward.2} parent=1 // pred_check
      _
    $region3: #{attention_forward.2} parent=1 // pred_check_branch
      %9 = sbr.rel (0) target = $region5
    $region4: #{attention_forward.2} parent=1 // pred_region
      _
    $region5: #{attention_forward.2} parent=1 // pred_fallthru
      _
    // Predicated region
    $region6: #{attention_forward.2} parent=1 // pred_check
      _
    $region7: #{attention_forward.2} parent=1 // pred_check_branch
      %11 = sbr.rel (0) target = $region9
    $region8: #{attention_forward.2} parent=1 // pred_region
      %s13 = ssub.s32 256, 256
      %14 = vsyncadd [#allocation3], %s13
      %s15 = sshll.u32 [#allocation2], 4
      %s16 = int_to_ptr.vmem [resolvable:$true] %s15
      %21 = dma.hbm_to_vmem [thread:$0]  %s1, 256, %s16, [#allocation3], 32, 32, 2
    $region9: #{attention_forward.2} parent=1 // pred_fallthru
      _
    // Predicated region
    $region10: #{attention_forward.2} parent=1 // pred_check
      _
    $region11: #{attention_forward.2} parent=1 // pred_check_branch
      %23 = sbr.rel (0) target = $region13
    $region12: #{attention_forward.2} parent=1 // pred_region
      %24 = dma.done [#allocation3], 256
    $region13: #{attention_forward.2} parent=1 // pred_fallthru
      _
    %v25 = vld [vmem:[%s0] sm:$0x3]
    %v26 = vld [vmem:[#allocation2] sm:$0x3]
    %v27 = vld [vmem:[#allocation2 + $0x2] sm:$0x3]
    %v28 = vld [vmem:[#allocation2 + $0x4] sm:$0x3]
    %v29 = vld [vmem:[#allocation2 + $0x6] sm:$0x3]
    %v30 = vld [vmem:[#allocation2 + $0x8] sm:$0x3]
    %v31 = vld [vmem:[#allocation2 + $0xa] sm:$0x3]
    %v32 = vld [vmem:[#allocation2 + $0xc] sm:$0x3]
    %v33 = vld [vmem:[#allocation2 + $0xe] sm:$0x3]
    %v34 = vmul.f32 %v26, %v25
    %v35 = vmul.f32 %v27, %v25
    %v36 = vmul.f32 %v28, %v25
    %v37 = vmul.f32 %v29, %v25
    %v38 = vmul.f32 %v30, %v25
    %v39 = vmul.f32 %v31, %v25
    %v40 = vmul.f32 %v32, %v25
    %v41 = vmul.f32 %v33, %v25
    %vm42 = vcmask 254976
    %v43 = vsel %vm42, %v34, 0.0
    %44 = vadd.xlane.f32.xlu0 %v43
    %v45 = vpop.xlane.xlu0 %44
    %v46 = vsel %vm42, %v35, 0.0
    %47 = vadd.xlane.f32.xlu0 %v46
    %v48 = vpop.xlane.xlu0 %47
    %v49 = vsel %vm42, %v36, 0.0
    %50 = vadd.xlane.f32.xlu0 %v49
    %v51 = vpop.xlane.xlu0 %50
    %v52 = vsel %vm42, %v37, 0.0
    %53 = vadd.xlane.f32.xlu0 %v52
    %v54 = vpop.xlane.xlu0 %53
    %v55 = vsel %vm42, %v38, 0.0
    %56 = vadd.xlane.f32.xlu0 %v55
    %v57 = vpop.xlane.xlu0 %56
    %v58 = vsel %vm42, %v39, 0.0
    %59 = vadd.xlane.f32.xlu0 %v58
    %v60 = vpop.xlane.xlu0 %59
    %v61 = vsel %vm42, %v40, 0.0
    %62 = vadd.xlane.f32.xlu0 %v61
    %v63 = vpop.xlane.xlu0 %62
    %v64 = vsel %vm42, %v41, 0.0
    %65 = vadd.xlane.f32.xlu0 %v64
    %v66 = vpop.xlane.xlu0 %65
    %v75 = vlaneseq
    %v76 = vand.u32 %v75, 127
    %v77 = vlaneseq
    %v78 = vshrl.u32 %v77, 7
    %v79 = vsub.s32 %v76, %v78
    %v80 = vrot.slane %v45, %v79
    %v81 = vlaneseq
    %v82 = vshrl.u32 %v81, 7
    %v83 = vsub.s32 %v76, %v82
    %v84 = vrot.slane %v48, %v83
    %v85 = vlaneseq
    %v86 = vshrl.u32 %v85, 7
    %v87 = vsub.s32 %v76, %v86
    %v88 = vrot.slane %v51, %v87
    %v89 = vlaneseq
    %v90 = vshrl.u32 %v89, 7
    %v91 = vsub.s32 %v76, %v90
    %v92 = vrot.slane %v54, %v91
    %v93 = vlaneseq
    %v94 = vshrl.u32 %v93, 7
    %v95 = vsub.s32 %v76, %v94
    %v96 = vrot.slane %v57, %v95
    %v97 = vlaneseq
    %v98 = vshrl.u32 %v97, 7
    %v99 = vsub.s32 %v76, %v98
    %v100 = vrot.slane %v60, %v99
    %v101 = vlaneseq
    %v102 = vshrl.u32 %v101, 7
    %v103 = vsub.s32 %v76, %v102
    %v104 = vrot.slane %v63, %v103
    %v105 = vlaneseq
    %v106 = vshrl.u32 %v105, 7
    %v107 = vsub.s32 %v76, %v106
    %v108 = vrot.slane %v66, %v107
    %vm109 = vcmask 1041409
    %v110 = vsel %vm109, %v84, %v80
    %vm111 = vcmask 1042434
    %v112 = vsel %vm111, %v88, %v110
    %vm113 = vcmask 1043459
    %v114 = vsel %vm113, %v92, %v112
    %vm115 = vcmask 1044484
    %v116 = vsel %vm115, %v96, %v114
    %vm117 = vcmask 1045509
    %v118 = vsel %vm117, %v100, %v116
    %vm119 = vcmask 1046534
    %v120 = vsel %vm119, %v104, %v118
    %vm121 = vcmask 1047559
    %v122 = vsel %vm121, %v108, %v120
    %vm124 = vcmask 15360
    %125 = vst.msk [vmem:[%s2] sm:$0xff] %vm124, %v122
    // Predicated region
    $region14: #{attention_forward.2} parent=1 // pred_check
      _
    $region15: #{attention_forward.2} parent=1 // pred_check_branch
      %127 = sbr.rel (0) target = $region17
    $region16: #{attention_forward.2} parent=1 // pred_region
      _
    $region17: #{attention_forward.2} parent=1 // pred_fallthru
      _
    // Predicated region
    $region18: #{attention_forward.2} parent=1 // pred_check
      _
    $region19: #{attention_forward.2} parent=1 // pred_check_branch
      %129 = sbr.rel (0) target = $region21
    $region20: #{attention_forward.2} parent=1 // pred_region
      _
    $region21: #{attention_forward.2} parent=1 // pred_fallthru
      _
    %130 = vsyncpa [#allocation3], 1

// kernel: attention_forward.3
$region0: #{attention_forward.3}
  #allocation0 [shape = 'u32[]', space=smem, size = 0x4, offset = 0x4, fixed_abs, tag = 'smem constant byte address 0x4 - core index']
  #allocation1 [shape = 'u32[144,128]{1,0:T(1,128)}', space=vmem, size = 0x12000, scoped, tag = 'internal scratch']
  %s0 = inlined_call_operand.vmem [shape: f32[8,2], index: 0, kind: input, shape index: {}]
  %s1 = inlined_call_operand.vmem [shape: f32[8,2], index: 1, kind: output, shape index: {}]
  %s2 = sld [smem:[#allocation0]]
  $region14: #{attention_forward.3} parent=0
    _
  %s4 = ssub.s32 1, %s2
  %s5 = scalar_select 0, %s4, %s2
  // Predicated region
  $region2: #{attention_forward.3} parent=0 // pred_check
    _
  $region3: #{attention_forward.3} parent=0 // pred_check_branch
    %7 = sbr.rel (0) target = $region5
  $region4: #{attention_forward.3} parent=0 // pred_region
    _
  $region5: #{attention_forward.3} parent=0 // pred_fallthru
    _
  %v8 = vld [vmem:[%s0] sm:$0xff]
  %vm9 = vcmask 15360
  %v10 = vsel %vm9, %v8, -inf
  %v11 = vrot.slane %v10, 4
  %v12 = vmax.f32 %v10, %v11
  %v13 = vrot.slane %v12, 2
  %v14 = vmax.f32 %v12, %v13
  %v15 = vrot.slane %v14, 1
  %v16 = vmax.f32 %v14, %v15
  %v17 = vsub.f32 %v8, %v16
  %v18 = vmul.f32 %v17, 1.442695
  %v19 = vpow.pop %v18
  %v20 = vsel %vm9, %v19, 0.0
  %v21 = vrot.slane %v20, 4
  %v22 = vadd.f32 %v20, %v21
  %v23 = vrot.slane %v22, 2
  %v24 = vadd.f32 %v22, %v23
  %v25 = vrot.slane %v24, 1
  %v26 = vadd.f32 %v24, %v25
  %v27 = vrcp.pop %v26
  %v28 = vmul.f32 %v26, %v27
  %v29 = vsub.f32 2.0, %v28
  %v30 = vmul.f32 %v27, %v29
  %v31 = vmul.f32 %v19, %v30
  %32 = vst.msk [vmem:[%s1] sm:$0xff] %vm9, %v31
  // Predicated region
  $region6: #{attention_forward.3} parent=0 // pred_check
    _
  $region7: #{attention_forward.3} parent=0 // pred_check_branch
    %34 = sbr.rel (0) target = $region9
  $region8: #{attention_forward.3} parent=0 // pred_region
    _
  $region9: #{attention_forward.3} parent=0 // pred_fallthru
    _
  // Predicated region
  $region10: #{attention_forward.3} parent=0 // pred_check
    _
  $region11: #{attention_forward.3} parent=0 // pred_check_branch
    %36 = sbr.rel (0) target = $region13
  $region12: #{attention_forward.3} parent=0 // pred_region
    _
  $region13: #{attention_forward.3} parent=0 // pred_fallthru
    _

</llo_original>
